<compile_context>
chip_gen: v5e
topology: v5e:2x2
jax: 0.10.0
libtpu: 0.0.40
codegen_flags: <defaults>
</compile_context>

<pallas_src>
import jax
import jax.numpy as jnp
from jax.experimental import pallas as pl
from jax.experimental.pallas import tpu as pltpu


def _round_up(v, m):
    return ((v + m - 1) // m) * m


def _fused_rowsum_kernel(x_ref, w_ref, b_ref, o_ref):
    """x_ref: (TM, IN) tile, rows on sublanes / IN on lanes.
    w_ref: (1, IN) f32 row (fused W.sum(0)); b_ref: (1, 1) f32 SMEM scalar
    (fused b.sum()); o_ref: (TM, 1).
    o[t, 0] = sum_k x[t, k] * w[0, k] + b."""
    prod = x_ref[...].astype(jnp.float32) * w_ref[...]     # VPU (in-kernel upcast)
    acc = jnp.sum(prod, axis=1, keepdims=True)              # lane reduce on XLU
    o_ref[...] = (acc + b_ref[0, 0]).astype(o_ref.dtype)


def linear_then_sum(x, weight, bias, *, tm=None, use_pallas=None):
    """Returns sum(x @ W^T + b, axis=-1, keepdims=True), shape (..., 1)."""
    in_features = x.shape[-1]
    lead = x.shape[:-1]
    x2d = x.reshape(-1, in_features)
    m = x2d.shape[0]
    out_dtype = x.dtype

    # Algebraic fusion of the OUT reduction into the parameters.
    w_sum = weight.astype(jnp.float32).sum(axis=0)          # (IN,)
    b_sum = bias.astype(jnp.float32).sum()                  # ()

    if use_pallas is None:
        # Tiny workloads: fixed pallas_call costs dominate; plain XLA wins.
        use_pallas = (m * in_features) >= 4096

    if not use_pallas:
        out = x2d.astype(jnp.float32) @ w_sum[:, None] + b_sum
        return out.astype(out_dtype).reshape(*lead, 1)

    itemsize = x2d.dtype.itemsize
    if tm is None:
        # VMEM budget ~24 MiB (safe on v5e/v6e and v7x's 64 MiB VMEM):
        #   2 * tm*IN*itemsize  (double-buffered x tile)
        # + 1 * tm*IN*4         (worst-case f32 product temporary)
        budget = 24 * 1024 * 1024
        tm = budget // (in_features * (2 * itemsize + 4))
        tm = max(8, min(int(tm), 4096))
        tm = (tm // 8) * 8
    if tm >= m:
        tm = m                                              # single full-extent tile
    else:
        tm = max(8, (tm // 8) * 8)
        n_tiles = -(-m // tm)
        # v7x has 2 TensorCores: prefer an even parallel tile count.
        if n_tiles > 1 and n_tiles % 2 == 1:
            tm_even = _round_up(-(-m // (n_tiles + 1)), 8)
            if tm_even >= 8:
                tm = tm_even

    n_tiles = -(-m // tm)                                   # partial last tile is OK
    grid = (n_tiles,)

    w_row = w_sum.reshape(1, in_features)                   # f32, resident in VMEM
    b_smem = b_sum.reshape(1, 1)

    vmem_needed = (2 * tm * in_features * itemsize          # x double buffer
                   + tm * in_features * 4                   # f32 product temp
                   + 2 * tm * 4                             # out double buffer
                   + 2 * in_features * 4                    # w row
                   + (4 << 20))                             # headroom
    vmem_limit = int(min(max(vmem_needed, 16 << 20), 48 << 20))

    out = pl.pallas_call(
        _fused_rowsum_kernel,
        out_shape=jax.ShapeDtypeStruct((m, 1), out_dtype),
        grid=grid,
        in_specs=[
            pl.BlockSpec((tm, in_features), lambda i: (i, 0)),   # x, natural layout
            pl.BlockSpec((1, in_features), lambda i: (0, 0)),    # w_sum row, resident
            pl.BlockSpec(memory_space=pltpu.MemorySpace.SMEM),   # b_sum scalar
        ],
        out_specs=pl.BlockSpec((tm, 1), lambda i: (i, 0)),
        compiler_params=pltpu.CompilerParams(
            dimension_semantics=("parallel",),
            vmem_limit_bytes=vmem_limit,
        ),
    )(x2d, w_row, b_smem)

    return out.reshape(*lead, 1)


if __name__ == "__main__":
    key = jax.random.PRNGKey(0)
    k1, k2, k3, k4, k5, k6 = jax.random.split(key, 6)

    # --- exact module shapes: x1 = (1, 2, 2); Linear(2, 3) ---
    x1 = jax.random.normal(k1, (1, 2, 2), dtype=jnp.float32)
    bound1 = 1.0 / jnp.sqrt(2.0)
    w1 = jax.random.uniform(k2, (3, 2), jnp.float32, -bound1, bound1)
    b1 = jax.random.uniform(k3, (3,), jnp.float32, -bound1, bound1)
    out1 = jax.block_until_ready(linear_then_sum(x1, w1, b1))
    ref1 = jnp.sum(x1 @ w1.T + b1, axis=-1, keepdims=True)
    assert out1.shape == (1, 2, 1), out1.shape
    assert jnp.allclose(out1, ref1, atol=1e-5), (out1, ref1)

    # --- modest shape forced through the Pallas path (multi-tile grid) ---
    x2 = jax.random.normal(k4, (2, 128, 32), dtype=jnp.float32)   # M=256, IN=32
    bound2 = 1.0 / jnp.sqrt(32.0)
    w2 = jax.random.uniform(k5, (3, 32), jnp.float32, -bound2, bound2)
    b2 = jax.random.uniform(k6, (3,), jnp.float32, -bound2, bound2)
    out2 = jax.block_until_ready(
        linear_then_sum(x2, w2, b2, tm=64, use_pallas=True))      # 4 even tiles
    ref2 = jnp.sum(x2 @ w2.T + b2, axis=-1, keepdims=True)
    assert out2.shape == (2, 128, 1), out2.shape
    assert jnp.allclose(out2, ref2, atol=1e-4), float(jnp.max(jnp.abs(out2 - ref2)))

    print("KERNEL_OK")
</pallas_src>

<mosaic_0001>
module attributes {stable_mosaic.version = 11 : i64} {
  func.func @_fused_rowsum_kernel(%arg0: i32, %arg1: memref<64x32xf32, #tpu.memory_space<vmem>>, %arg2: memref<1x32xf32, #tpu.memory_space<vmem>>, %arg3: memref<1x1xf32, #tpu.memory_space<smem>>, %arg4: memref<64x1xf32, #tpu.memory_space<vmem>>) attributes {dimension_semantics = [#tpu.dimension_semantics<parallel>], iteration_bounds = array<i64: 4>, scalar_prefetch = 0 : i64, scratch_operands = 0 : i64, tpu.core_type = #tpu.core_type<tc>, window_params = [{transform_indices = @transform_0, window_bounds = array<i64: 64, 32>}, {pipeline_mode = #tpu.pipeline_mode<synchronous>, transform_indices = @transform_1, window_bounds = array<i64: 1, 32>}, {transform_indices = @transform_2, window_bounds = array<i64: 1, 1>}, {transform_indices = @transform_3, window_bounds = array<i64: 64, 1>}]} {
    %c0 = arith.constant 0 : index
    %c0_0 = arith.constant 0 : index
    %0 = vector.load %arg1[%c0, %c0_0] : memref<64x32xf32, #tpu.memory_space<vmem>>, vector<64x32xf32>
    %c0_1 = arith.constant 0 : index
    %c0_2 = arith.constant 0 : index
    %1 = vector.load %arg2[%c0_1, %c0_2] : memref<1x32xf32, #tpu.memory_space<vmem>>, vector<1x32xf32>
    %2 = vector.broadcast %1 : vector<1x32xf32> to vector<64x32xf32>
    %3 = arith.mulf %0, %2 : vector<64x32xf32>
    %cst = arith.constant dense<0.000000e+00> : vector<64xf32>
    %4 = vector.multi_reduction <add>, %3, %cst [1] : vector<64x32xf32> to vector<64xf32>
    %5 = vector.shape_cast %4 : vector<64xf32> to vector<64x1xf32>
    %c0_3 = arith.constant 0 : index
    %c0_4 = arith.constant 0 : index
    %6 = memref.load %arg3[%c0_3, %c0_4] : memref<1x1xf32, #tpu.memory_space<smem>>
    %7 = vector.broadcast %6 : f32 to vector<64x1xf32>
    %8 = arith.addf %5, %7 : vector<64x1xf32>
    %c0_5 = arith.constant 0 : index
    %c0_6 = arith.constant 0 : index
    %9 = vector.load %arg4[%c0_5, %c0_6] : memref<64x1xf32, #tpu.memory_space<vmem>>, vector<64x1xf32>
    tpu.vector_store %arg4[%c0_5, %c0_6], %8 {strides = array<i32>} : memref<64x1xf32, #tpu.memory_space<vmem>>, vector<64x1xf32>,
    return
  }
  func.func @transform_0(%arg0: i32) -> (i32, i32) {
    %c0_i32 = arith.constant 0 : i32
    %c0_i32_0 = arith.constant 0 : i32
    return %arg0, %c0_i32 : i32, i32
  }
  func.func @transform_1(%arg0: i32) -> (i32, i32) {
    %c0_i32 = arith.constant 0 : i32
    %c0_i32_0 = arith.constant 0 : i32
    %c0_i32_1 = arith.constant 0 : i32
    return %c0_i32, %c0_i32_0 : i32, i32
  }
  func.func @transform_2(%arg0: i32) -> (i32, i32) {
    %c0_i32 = arith.constant 0 : i32
    %c0_i32_0 = arith.constant 0 : i32
    %c0_i32_1 = arith.constant 0 : i32
    return %c0_i32, %c0_i32_0 : i32, i32
  }
  func.func @transform_3(%arg0: i32) -> (i32, i32) {
    %c0_i32 = arith.constant 0 : i32
    %c0_i32_0 = arith.constant 0 : i32
    return %arg0, %c0_i32 : i32, i32
  }
}

</mosaic_0001>

<llo_original>
// kernel: tpu_custom_call.1
$region0: #{tpu_custom_call.1}
  #allocation0 [shape = 'u32[]', space=smem, size = 0x4, offset = 0x4, fixed_abs, tag = 'smem constant byte address 0x4 - core index']
  #allocation1 [shape = 'u32[72,128]{1,0:T(1,128)}', space=vmem, size = 0x9000, scoped, tag = 'internal scratch']
  #allocation2 [shape = 'f32[1,1]{1,0:T(1,128)S(6)}', space=smem, size = 0x200, scoped, tag = 'scoped memory for tpu_custom_call.1']
  %s0 = inlined_call_operand.vmem [shape: f32[256,32], index: 0, kind: input, shape index: {}]
  %s1 = inlined_call_operand.vmem [shape: f32[1,32], index: 1, kind: input, shape index: {}]
  %s2 = inlined_call_operand.<no memory space> [shape: f32[1,1], index: 2, kind: input, shape index: {}]
  %s3 = inlined_call_operand.vmem [shape: f32[256,1], index: 3, kind: output, shape index: {}]
  %s4 = sld [smem:[#allocation0]]
  $region45: #{tpu_custom_call.1} parent=0
    _
  %s6 = ssub.s32 1, %s4
  %s7 = scalar_select 0, %s6, %s4
  %8 = sst [smem:[#allocation2]] %s2
  loop: start=0, step=1, limit=6
  $region2: #{tpu_custom_call.1} parent=0 // loop_pre_header
    _
  $region3: #{tpu_custom_call.1} parent=0 // loop_header
    %s10 = sphi 0, %s14
    %p11 = scmp.ge.s32.totalorder %s10, 6
    %s20 = sphi 0, %s22
    %s23 = sphi 0, %s20
    %s24 = sphi 0, %s23
    %s40 = sphi 0, %s24
    %s44 = sphi 0, %s44
    %s46 = sphi 0, %s44
    %s47 = sphi 0, %s46
    %s61 = sphi 0, %s47
    %s65 = sphi 0, %s65
    %s67 = sphi 0, %s65
    %s68 = sphi 0, %s67
    %s82 = sphi 0, %s68
    %s88 = sphi 0, %s90
    %s91 = sphi 0, %s88
    %s92 = sphi 0, %s91
    %s108 = sphi 0, %s92
  $region4: #{tpu_custom_call.1} parent=0 // loop_header_branch
    %13 = sbr.rel (%p11) target = $region8
  $region5: #{tpu_custom_call.1} parent=0 // loop_body
    %s15 = ssub.s32 %s10, 1
    %s16 = ssub.s32 %s10, 2
    %s17 = sadd.s32 %s10, 1
    %s18 = ssub.s32 %s10, %s17
    %p19 = scmp.eq.s32.totalorder %s18, 0
    %s21 = sadd.s32 %s20, 1
    %s22 = scalar_select %p19, %s20, %s21
    %p25 = pneg %p19
    %p26 = scmp.eq.s32.totalorder %s10, 3
    %p27 = por %p25, %p26
    %p28 = scmp.ne.s32.totalorder %s20, %s23
    %p29 = scmp.eq.s32.totalorder %s10, 0
    %p30 = por %p28, %p29
    %p31 = scmp.ne.s32.totalorder %s20, %s23
    %p32 = scmp.eq.s32.totalorder %s15, 3
    %p33 = por %p31, %p32
    %p34 = scmp.ne.s32.totalorder %s23, %s24
    %p35 = scmp.eq.s32.totalorder %s15, 0
    %p36 = por %p34, %p35
    %p37 = scmp.ne.s32.totalorder %s23, %s24
    %p38 = scmp.eq.s32.totalorder %s16, 3
    %p39 = por %p37, %p38
    %p41 = scmp.ne.s32.totalorder %s24, %s40
    %p42 = scmp.eq.s32.totalorder %s16, 0
    %p43 = por %p41, %p42
    %s45 = sadd.s32 %s44, 1
    %p48 = scmp.eq.s32.totalorder %s10, 3
    %p49 = scmp.ne.s32.totalorder %s44, %s46
    %p50 = scmp.eq.s32.totalorder %s10, 0
    %p51 = por %p49, %p50
    %p52 = scmp.ne.s32.totalorder %s44, %s46
    %p53 = scmp.eq.s32.totalorder %s15, 3
    %p54 = por %p52, %p53
    %p55 = scmp.ne.s32.totalorder %s46, %s47
    %p56 = scmp.eq.s32.totalorder %s15, 0
    %p57 = por %p55, %p56
    %p58 = scmp.ne.s32.totalorder %s46, %s47
    %p59 = scmp.eq.s32.totalorder %s16, 3
    %p60 = por %p58, %p59
    %p62 = scmp.ne.s32.totalorder %s47, %s61
    %p63 = scmp.eq.s32.totalorder %s16, 0
    %p64 = por %p62, %p63
    %s66 = sadd.s32 %s65, 1
    %p69 = scmp.eq.s32.totalorder %s10, 3
    %p70 = scmp.ne.s32.totalorder %s65, %s67
    %p71 = scmp.eq.s32.totalorder %s10, 0
    %p72 = por %p70, %p71
    %p73 = scmp.ne.s32.totalorder %s65, %s67
    %p74 = scmp.eq.s32.totalorder %s15, 3
    %p75 = por %p73, %p74
    %p76 = scmp.ne.s32.totalorder %s67, %s68
    %p77 = scmp.eq.s32.totalorder %s15, 0
    %p78 = por %p76, %p77
    %p79 = scmp.ne.s32.totalorder %s67, %s68
    %p80 = scmp.eq.s32.totalorder %s16, 3
    %p81 = por %p79, %p80
    %p83 = scmp.ne.s32.totalorder %s68, %s82
    %p84 = scmp.eq.s32.totalorder %s16, 0
    %p85 = por %p83, %p84
    %s86 = ssub.s32 %s10, %s17
    %p87 = scmp.eq.s32.totalorder %s86, 0
    %s89 = sadd.s32 %s88, 1
    %s90 = scalar_select %p87, %s88, %s89
    %p93 = pneg %p87
    %p94 = scmp.eq.s32.totalorder %s10, 3
    %p95 = por %p93, %p94
    %p96 = scmp.ne.s32.totalorder %s88, %s91
    %p97 = scmp.eq.s32.totalorder %s10, 0
    %p98 = por %p96, %p97
    %p99 = scmp.ne.s32.totalorder %s88, %s91
    %p100 = scmp.eq.s32.totalorder %s15, 3
    %p101 = por %p99, %p100
    %p102 = scmp.ne.s32.totalorder %s91, %s92
    %p103 = scmp.eq.s32.totalorder %s15, 0
    %p104 = por %p102, %p103
    %p105 = scmp.ne.s32.totalorder %s91, %s92
    %p106 = scmp.eq.s32.totalorder %s16, 3
    %p107 = por %p105, %p106
    %p109 = scmp.ne.s32.totalorder %s92, %s108
    %p110 = scmp.eq.s32.totalorder %s16, 0
    %p111 = por %p109, %p110
    %p112 = scmp.le.s32.totalorder 1, %s10
    %p113 = scmp.lt.s32.totalorder %s10, 5
    %p114 = pnand %p112, %p113
    %p115 = pneg %p114
    // Predicated region
    $region9: #{tpu_custom_call.1} parent=5 // pred_check
      _
    $region10: #{tpu_custom_call.1} parent=5 // pred_check_branch
      %117 = sbr.rel (%p114) target = $region12
    $region11: #{tpu_custom_call.1} parent=5 // pred_region
      %s118 = ssub.s32 %s10, 1
      // Predicated region
      $region13: #{tpu_custom_call.1} parent=11 // pred_check
        %p119 = pneg %p57
      $region14: #{tpu_custom_call.1} parent=11 // pred_check_branch
        %121 = sbr.rel (%p119) target = $region16
      $region15: #{tpu_custom_call.1} parent=11 // pred_region
        _
      $region16: #{tpu_custom_call.1} parent=11 // pred_fallthru
        _
      // Predicated region
      $region17: #{tpu_custom_call.1} parent=11 // pred_check
        %p122 = pneg %p78
      $region18: #{tpu_custom_call.1} parent=11 // pred_check_branch
        %124 = sbr.rel (%p122) target = $region20
      $region19: #{tpu_custom_call.1} parent=11 // pred_region
        _
      $region20: #{tpu_custom_call.1} parent=11 // pred_fallthru
        _
    $region12: #{tpu_custom_call.1} parent=5 // pred_fallthru
      _
    %p125 = scmp.lt.s32.totalorder %s10, 4
    // Predicated region
    $region21: #{tpu_custom_call.1} parent=5 // pred_check
      %p126 = pneg %p125
    $region22: #{tpu_custom_call.1} parent=5 // pred_check_branch
      %128 = sbr.rel (%p126) target = $region24
    $region23: #{tpu_custom_call.1} parent=5 // pred_region
      // Predicated region
      $region25: #{tpu_custom_call.1} parent=23 // pred_check
        %p129 = pneg %p30
      $region26: #{tpu_custom_call.1} parent=23 // pred_check_branch
        %131 = sbr.rel (%p129) target = $region28
      $region27: #{tpu_custom_call.1} parent=23 // pred_region
        %s132 = smul.u32 8, %s10
        %p133 = scmp.lt.s32.totalorder %s132, 31
        %s134 = scalar_select %p133, %s132, 31
        %s135 = smul.addr %s134, 8
        %s136 = scalar_lea.vmem %s0, %s135
        %s137 = smul.u32 8, %s10
      $region28: #{tpu_custom_call.1} parent=23 // pred_fallthru
        _
    $region24: #{tpu_custom_call.1} parent=5 // pred_fallthru
      _
    %p138 = scmp.le.s32.totalorder 1, %s10
    %p139 = scmp.lt.s32.totalorder %s10, 5
    %p140 = pnand %p138, %p139
    %p141 = pneg %p140
    // Predicated region
    $region29: #{tpu_custom_call.1} parent=5 // pred_check
      _
    $region30: #{tpu_custom_call.1} parent=5 // pred_check_branch
      %143 = sbr.rel (%p140) target = $region32
    $region31: #{tpu_custom_call.1} parent=5 // pred_region
      %s144 = ssub.s32 %s10, 1
      %s145 = smul.u32 8, %s15
      %p146 = scmp.lt.s32.totalorder %s145, 31
      %s147 = scalar_select %p146, %s145, 31
      %s148 = smul.addr %s147, 8
      %s149 = scalar_lea.vmem %s0, %s148
      %p150 = pneg %p36
      %p151 = pneg %p33
      %p152 = pneg %p57
      %p153 = pneg %p54
      %p154 = pneg %p78
      %p155 = pneg %p75
      %p156 = pneg %p104
      %p157 = pneg %p101
      %s158 = smul.u32 8, %s15
      %p159 = scmp.lt.s32.totalorder %s158, 31
      %s160 = scalar_select %p159, %s158, 31
      %s161 = smul.addr %s160, 8
      %s162 = scalar_lea.vmem %s3, %s161
      %s163 = smul.u32 8, %s15
      %p164 = scmp.lt.s32.totalorder %s163, 31
      %s165 = scalar_select %p164, %s163, 31
      %s166 = smul.addr %s165, 8
      %s167 = scalar_lea.vmem %s0, %s166
      %s168 = smul.u32 8, %s15
      %s169 = smul.u32 8, %s15
      %p170 = scmp.lt.s32.totalorder %s169, 31
      %s171 = scalar_select %p170, %s169, 31
      %s172 = smul.addr %s171, 8
      %s173 = scalar_lea.vmem %s3, %s172
      %s174 = smul.u32 8, %s15
      %v175 = vld [vmem:[%s167] sm:$0xff]
      %v176 = vld [vmem:[%s167 + $0x8] sm:$0xff]
      %v177 = vld [vmem:[%s167 + $0x10] sm:$0xff]
      %v178 = vld [vmem:[%s167 + $0x18] sm:$0xff]
      %v179 = vld [vmem:[%s167 + $0x20] sm:$0xff]
      %v180 = vld [vmem:[%s167 + $0x28] sm:$0xff]
      %v181 = vld [vmem:[%s167 + $0x30] sm:$0xff]
      %v182 = vld [vmem:[%s167 + $0x38] sm:$0xff]
      %v183 = vld [vmem:[%s1] sm:$0x1]
      %v185 = vperm.slane %v183, 0
      %v187 = vmul.f32 %v175, %v185
      %v188 = vmul.f32 %v176, %v185
      %v189 = vmul.f32 %v177, %v185
      %v190 = vmul.f32 %v178, %v185
      %v191 = vmul.f32 %v179, %v185
      %v192 = vmul.f32 %v180, %v185
      %v193 = vmul.f32 %v181, %v185
      %v194 = vmul.f32 %v182, %v185
      %vm195 = vcmask 261120
      %v196 = vsel %vm195, %v187, 0.0
      %197 = vadd.xlane.f32.xlu0 %v196
      %v198 = vpop.xlane.xlu0 %197
      %v199 = vsel %vm195, %v188, 0.0
      %200 = vadd.xlane.f32.xlu0 %v199
      %v201 = vpop.xlane.xlu0 %200
      %v202 = vsel %vm195, %v189, 0.0
      %203 = vadd.xlane.f32.xlu0 %v202
      %v204 = vpop.xlane.xlu0 %203
      %v205 = vsel %vm195, %v190, 0.0
      %206 = vadd.xlane.f32.xlu0 %v205
      %v207 = vpop.xlane.xlu0 %206
      %v208 = vsel %vm195, %v191, 0.0
      %209 = vadd.xlane.f32.xlu0 %v208
      %v210 = vpop.xlane.xlu0 %209
      %v211 = vsel %vm195, %v192, 0.0
      %212 = vadd.xlane.f32.xlu0 %v211
      %v213 = vpop.xlane.xlu0 %212
      %v214 = vsel %vm195, %v193, 0.0
      %215 = vadd.xlane.f32.xlu0 %v214
      %v216 = vpop.xlane.xlu0 %215
      %v217 = vsel %vm195, %v194, 0.0
      %218 = vadd.xlane.f32.xlu0 %v217
      %v219 = vpop.xlane.xlu0 %218
      %s220 = sld [smem:[#allocation2]]
      %v221 = vstv %s220
      %v222 = vadd.f32 %v198, %v221
      %v223 = vadd.f32 %v201, %v221
      %v224 = vadd.f32 %v204, %v221
      %v225 = vadd.f32 %v207, %v221
      %v226 = vadd.f32 %v210, %v221
      %v227 = vadd.f32 %v213, %v221
      %v228 = vadd.f32 %v216, %v221
      %v229 = vadd.f32 %v219, %v221
      %vm230 = vcmask 7168
      %231 = vst.msk [vmem:[%s173] sm:$0xff] %vm230, %v222
      %232 = vst.msk [vmem:[%s173 + $0x8] sm:$0xff] %vm230, %v223
      %233 = vst.msk [vmem:[%s173 + $0x10] sm:$0xff] %vm230, %v224
      %234 = vst.msk [vmem:[%s173 + $0x18] sm:$0xff] %vm230, %v225
      %235 = vst.msk [vmem:[%s173 + $0x20] sm:$0xff] %vm230, %v226
      %236 = vst.msk [vmem:[%s173 + $0x28] sm:$0xff] %vm230, %v227
      %237 = vst.msk [vmem:[%s173 + $0x30] sm:$0xff] %vm230, %v228
      %238 = vst.msk [vmem:[%s173 + $0x38] sm:$0xff] %vm230, %v229
      %s239 = smul.u32 8, %s15
      %p240 = scmp.lt.s32.totalorder %s239, 31
      %s241 = scalar_select %p240, %s239, 31
      %s242 = smul.addr %s241, 8
      %s243 = scalar_lea.vmem %s3, %s242
      // Predicated region
      $region33: #{tpu_custom_call.1} parent=31 // pred_check
        %p244 = pneg %p101
      $region34: #{tpu_custom_call.1} parent=31 // pred_check_branch
        %246 = sbr.rel (%p244) target = $region36
      $region35: #{tpu_custom_call.1} parent=31 // pred_region
        %s247 = smul.u32 8, %s15
      $region36: #{tpu_custom_call.1} parent=31 // pred_fallthru
        _
    $region32: #{tpu_custom_call.1} parent=5 // pred_fallthru
      _
    %p248 = scmp.le.s32.totalorder 2, %s10
    // Predicated region
    $region37: #{tpu_custom_call.1} parent=5 // pred_check
      %p249 = pneg %p248
    $region38: #{tpu_custom_call.1} parent=5 // pred_check_branch
      %251 = sbr.rel (%p249) target = $region40
    $region39: #{tpu_custom_call.1} parent=5 // pred_region
      %s252 = ssub.s32 %s10, 2
      // Predicated region
      $region41: #{tpu_custom_call.1} parent=39 // pred_check
        %p253 = pneg %p107
      $region42: #{tpu_custom_call.1} parent=39 // pred_check_branch
        %255 = sbr.rel (%p253) target = $region44
      $region43: #{tpu_custom_call.1} parent=39 // pred_region
        %s256 = smul.u32 8, %s16
        %p257 = scmp.lt.s32.totalorder %s256, 31
        %s258 = scalar_select %p257, %s256, 31
        %s259 = smul.addr %s258, 8
        %s260 = scalar_lea.vmem %s3, %s259
      $region44: #{tpu_custom_call.1} parent=39 // pred_fallthru
        _
    $region40: #{tpu_custom_call.1} parent=5 // pred_fallthru
      _
  $region6: #{tpu_custom_call.1} parent=0 // loop_footer
    %s14 = sadd.s32 1, %s10
  $region7: #{tpu_custom_call.1} parent=0 // loop_footer_branch
    %9 = sbr.rel target = $region3
  $region8: #{tpu_custom_call.1} parent=0 // loop_exit
    _

</llo_original>
